<compile_context>
chip_gen: v7x
topology: tpu7x:2x2x1
jax: 0.10.0
libtpu: 0.0.40
codegen_flags: <defaults>
</compile_context>

<pallas_src>
import jax
import jax.numpy as jnp
from jax import lax
from jax.experimental import pallas as pl
from jax.experimental.pallas import tpu as pltpu

G_IN_DIM = 20
H1, H2, H3, OUT = 40, 80, 20, 5
OUT_PAD = 128          # lane-dense output width; real outputs live in lanes [0, OUT)
BN_EPS = 1e-5

# Row layout of the single packed parameter slab (168 x 128, f32, ~86 KiB).
W1_R0 = 0
W2_R0 = W1_R0 + G_IN_DIM          # 20
W3_R0 = W2_R0 + H1                # 60
W4_R0 = W3_R0 + H2                # 140
V_R0 = W4_R0 + H3                 # 160  (per-feature vectors)
SLAB_ROWS = V_R0 + 8              # 168  (multiple of 8 sublanes)


def generator_kernel(x_ref, w_ref, o_ref):
    x = x_ref[...]
    inv_b = 1.0 / x_ref.shape[0]        # static batch size -> trace-time constant

    def bn_relu(h, g, be):
        # One-sweep batch stats (biased variance, training-mode BN), then one FMA.
        s = jnp.sum(h, axis=0, keepdims=True)
        ss = jnp.sum(h * h, axis=0, keepdims=True)
        mu = s * inv_b
        var = ss * inv_b - mu * mu
        scale = g * lax.rsqrt(var + BN_EPS)      # rsqrt -> EUP slot (free-ish)
        shift = be - mu * scale
        return jnp.maximum(h * scale + shift, 0.0)

    # Static slices of the single parameter slab (zero-cost ref views).
    w1 = w_ref[W1_R0:W1_R0 + G_IN_DIM, 0:H1]
    w2 = w_ref[W2_R0:W2_R0 + H1, 0:H2]
    w3 = w_ref[W3_R0:W3_R0 + H2, 0:H3]
    w4 = w_ref[W4_R0:W4_R0 + H3, :]            # lane-padded to 128 columns
    g1, be1 = w_ref[V_R0 + 0:V_R0 + 1, 0:H1], w_ref[V_R0 + 1:V_R0 + 2, 0:H1]
    g2, be2 = w_ref[V_R0 + 2:V_R0 + 3, 0:H2], w_ref[V_R0 + 3:V_R0 + 4, 0:H2]
    g3, be3 = w_ref[V_R0 + 4:V_R0 + 5, 0:H3], w_ref[V_R0 + 5:V_R0 + 6, 0:H3]
    b4 = w_ref[V_R0 + 6:V_R0 + 7, :]           # lane-padded b4 (zeros beyond OUT)

    # Linear biases b1/b2/b3 are omitted on purpose: they cancel under training-
    # mode BN's batch-mean subtraction, so the math is identical.
    h = jnp.dot(x, w1, preferred_element_type=jnp.float32)
    h = bn_relu(h, g1, be1)

    h = jnp.dot(h, w2, preferred_element_type=jnp.float32)
    h = bn_relu(h, g2, be2)

    h = jnp.dot(h, w3, preferred_element_type=jnp.float32)
    h = bn_relu(h, g3, be3)

    # Full-width unmasked (B,128) store; real outputs in lanes [0, OUT).
    o_ref[...] = jnp.dot(h, w4, preferred_element_type=jnp.float32) + b4


def pack_params(params):
    """One-time layout work (NOT in the per-call path): drop BN-cancelled biases,
    pack every weight / per-feature vector into a single lane-dense (168,128)
    f32 slab, lane-padding the last layer to 128 output columns."""
    (w1, _b1, g1, be1, w2, _b2, g2, be2, w3, _b3, g3, be3, w4, b4) = params
    slab = jnp.zeros((SLAB_ROWS, OUT_PAD), jnp.float32)
    slab = slab.at[W1_R0:W1_R0 + G_IN_DIM, :H1].set(w1)
    slab = slab.at[W2_R0:W2_R0 + H1, :H2].set(w2)
    slab = slab.at[W3_R0:W3_R0 + H2, :H3].set(w3)
    slab = slab.at[W4_R0:W4_R0 + H3, :OUT].set(w4)
    slab = slab.at[V_R0 + 0, :H1].set(g1[0])
    slab = slab.at[V_R0 + 1, :H1].set(be1[0])
    slab = slab.at[V_R0 + 2, :H2].set(g2[0])
    slab = slab.at[V_R0 + 3, :H2].set(be2[0])
    slab = slab.at[V_R0 + 4, :H3].set(g3[0])
    slab = slab.at[V_R0 + 5, :H3].set(be3[0])
    slab = slab.at[V_R0 + 6, :OUT].set(b4[0])
    return slab


@jax.jit
def generator_forward(x, wslab):
    """Hot path: x (B,20) f32 + packed (168,128) slab -> lane-padded (B,128) f32.
    Real outputs are in lanes [0, OUT); downstream consumers should read those
    lanes directly (avoids an extra HBM round-trip for a wrapper-side slice)."""
    B = x.shape[0]
    vmem = pl.BlockSpec(memory_space=pltpu.MemorySpace.VMEM)
    return pl.pallas_call(
        generator_kernel,
        out_shape=jax.ShapeDtypeStruct((B, OUT_PAD), jnp.float32),
        in_specs=[vmem, vmem],
        out_specs=vmem,
    )(x, wslab)


def generator_forward_dense(x, wslab):
    """Convenience wrapper when a dense (B,5) array is mandatory."""
    return generator_forward(x, wslab)[:, :OUT]


def init_params(key):
    """Deterministic init mimicking PyTorch Linear defaults (uniform +-1/sqrt(fan_in));
    BatchNorm gamma=1, beta=0. Weights returned pre-transposed as (in, out).
    Linear biases ARE generated (PyTorch has them) -- the kernel just doesn't need
    the ones that precede BatchNorm."""
    dims = [(G_IN_DIM, H1), (H1, H2), (H2, H3), (H3, OUT)]
    params = []
    keys = jax.random.split(key, 2 * len(dims))
    for i, (fan_in, fan_out) in enumerate(dims):
        bound = 1.0 / jnp.sqrt(float(fan_in))
        w = jax.random.uniform(
            keys[2 * i], (fan_in, fan_out), jnp.float32, -bound, bound
        )
        b = jax.random.uniform(
            keys[2 * i + 1], (1, fan_out), jnp.float32, -bound, bound
        )
        params.append(w)
        params.append(b)
        if i < len(dims) - 1:  # BatchNorm after the first three linears only
            params.append(jnp.ones((1, fan_out), jnp.float32))   # gamma
            params.append(jnp.zeros((1, fan_out), jnp.float32))  # beta
    return tuple(params)


def reference_forward(x, params):
    """Pure-JAX reference with full PyTorch semantics (including pre-BN biases
    and the classic subtract-mean BN formulation)."""
    (w1, b1, g1, be1, w2, b2, g2, be2, w3, b3, g3, be3, w4, b4) = params

    def bn_relu(h, gamma, beta):
        mu = jnp.mean(h, axis=0, keepdims=True)
        var = jnp.mean((h - mu) * (h - mu), axis=0, keepdims=True)
        hn = (h - mu) * lax.rsqrt(var + BN_EPS)
        return jnp.maximum(hn * gamma + beta, 0.0)

    h = x @ w1 + b1
    h = bn_relu(h, g1, be1)
    h = h @ w2 + b2
    h = bn_relu(h, g2, be2)
    h = h @ w3 + b3
    h = bn_relu(h, g3, be3)
    return h @ w4 + b4


if __name__ == "__main__":
    key = jax.random.PRNGKey(0)
    k_x, k_p = jax.random.split(key)

    B = 8  # multiple of 8 sublanes; training-mode BatchNorm needs B > 1
    x = jax.random.normal(k_x, (B, G_IN_DIM), jnp.float32)
    params = init_params(k_p)

    # One-time parameter packing, outside the per-call hot path.
    wslab = jax.block_until_ready(pack_params(params))

    out_pad = jax.block_until_ready(generator_forward(x, wslab))
    out = out_pad[:, :OUT]   # consumer-side lane read (not part of the jitted path)

    ref = reference_forward(x, params)
    assert out.shape == (B, OUT)
    assert jnp.allclose(out, ref, atol=1e-4, rtol=1e-4)

    print("KERNEL_OK")
</pallas_src>

<mosaic_0001>
module attributes {stable_mosaic.version = 11 : i64} {
  func.func @generator_kernel(%arg0: memref<8x20xf32, #tpu.memory_space<vmem>>, %arg1: memref<168x128xf32, #tpu.memory_space<vmem>>, %arg2: memref<8x128xf32, #tpu.memory_space<vmem>>) attributes {dimension_semantics = [], scalar_prefetch = 0 : i64, scratch_operands = 0 : i64, tpu.core_type = #tpu.core_type<tc>} {
    %c0 = arith.constant 0 : index
    %c0_0 = arith.constant 0 : index
    %0 = vector.load %arg0[%c0, %c0_0] : memref<8x20xf32, #tpu.memory_space<vmem>>, vector<8x20xf32>
    %c0_1 = arith.constant 0 : index
    %c0_2 = arith.constant 0 : index
    %1 = vector.load %arg1[%c0_1, %c0_2] : memref<168x128xf32, #tpu.memory_space<vmem>>, vector<20x40xf32>
    %c20 = arith.constant 20 : index
    %c0_3 = arith.constant 0 : index
    %2 = vector.load %arg1[%c20, %c0_3] : memref<168x128xf32, #tpu.memory_space<vmem>>, vector<40x80xf32>
    %c60 = arith.constant 60 : index
    %c0_4 = arith.constant 0 : index
    %3 = vector.load %arg1[%c60, %c0_4] : memref<168x128xf32, #tpu.memory_space<vmem>>, vector<80x20xf32>
    %c140 = arith.constant 140 : index
    %c0_5 = arith.constant 0 : index
    %4 = vector.load %arg1[%c140, %c0_5] : memref<168x128xf32, #tpu.memory_space<vmem>>, vector<20x128xf32>
    %c160 = arith.constant 160 : index
    %c0_6 = arith.constant 0 : index
    %5 = vector.load %arg1[%c160, %c0_6] : memref<168x128xf32, #tpu.memory_space<vmem>>, vector<1x40xf32>
    %c161 = arith.constant 161 : index
    %c0_7 = arith.constant 0 : index
    %6 = vector.load %arg1[%c161, %c0_7] : memref<168x128xf32, #tpu.memory_space<vmem>>, vector<1x40xf32>
    %c162 = arith.constant 162 : index
    %c0_8 = arith.constant 0 : index
    %7 = vector.load %arg1[%c162, %c0_8] : memref<168x128xf32, #tpu.memory_space<vmem>>, vector<1x80xf32>
    %c163 = arith.constant 163 : index
    %c0_9 = arith.constant 0 : index
    %8 = vector.load %arg1[%c163, %c0_9] : memref<168x128xf32, #tpu.memory_space<vmem>>, vector<1x80xf32>
    %c164 = arith.constant 164 : index
    %c0_10 = arith.constant 0 : index
    %9 = vector.load %arg1[%c164, %c0_10] : memref<168x128xf32, #tpu.memory_space<vmem>>, vector<1x20xf32>
    %c165 = arith.constant 165 : index
    %c0_11 = arith.constant 0 : index
    %10 = vector.load %arg1[%c165, %c0_11] : memref<168x128xf32, #tpu.memory_space<vmem>>, vector<1x20xf32>
    %c166 = arith.constant 166 : index
    %c0_12 = arith.constant 0 : index
    %11 = vector.load %arg1[%c166, %c0_12] : memref<168x128xf32, #tpu.memory_space<vmem>>, vector<1x128xf32>
    %cst = arith.constant dense<0.000000e+00> : vector<8x40xf32>
    %12 = tpu.matmul %0, %1, %cst {dimension_numbers = #tpu.dot_dimension_numbers<[1], [0], [0], [1], [0, 0, 1, 1], [], []>} : vector<8x20xf32>, vector<20x40xf32>, vector<8x40xf32> -> vector<8x40xf32>
    %cst_13 = arith.constant dense<0.000000e+00> : vector<40xf32>
    %13 = vector.multi_reduction <add>, %12, %cst_13 [0] : vector<8x40xf32> to vector<40xf32>
    %14 = vector.shape_cast %13 : vector<40xf32> to vector<1x40xf32>
    %15 = arith.mulf %12, %12 : vector<8x40xf32>
    %cst_14 = arith.constant dense<0.000000e+00> : vector<40xf32>
    %16 = vector.multi_reduction <add>, %15, %cst_14 [0] : vector<8x40xf32> to vector<40xf32>
    %17 = vector.shape_cast %16 : vector<40xf32> to vector<1x40xf32>
    %cst_15 = arith.constant 1.250000e-01 : f32
    %18 = vector.broadcast %cst_15 : f32 to vector<1x40xf32>
    %19 = arith.mulf %14, %18 : vector<1x40xf32>
    %cst_16 = arith.constant 1.250000e-01 : f32
    %20 = vector.broadcast %cst_16 : f32 to vector<1x40xf32>
    %21 = arith.mulf %17, %20 : vector<1x40xf32>
    %22 = arith.mulf %19, %19 : vector<1x40xf32>
    %23 = arith.subf %21, %22 : vector<1x40xf32>
    %cst_17 = arith.constant 9.99999974E-6 : f32
    %24 = vector.broadcast %cst_17 : f32 to vector<1x40xf32>
    %25 = arith.addf %23, %24 : vector<1x40xf32>
    %26 = math.rsqrt %25 : vector<1x40xf32>
    %27 = arith.mulf %5, %26 : vector<1x40xf32>
    %28 = arith.mulf %19, %27 : vector<1x40xf32>
    %29 = arith.subf %6, %28 : vector<1x40xf32>
    %30 = vector.broadcast %27 : vector<1x40xf32> to vector<8x40xf32>
    %31 = arith.mulf %12, %30 : vector<8x40xf32>
    %32 = vector.broadcast %29 : vector<1x40xf32> to vector<8x40xf32>
    %33 = arith.addf %31, %32 : vector<8x40xf32>
    %cst_18 = arith.constant 0.000000e+00 : f32
    %34 = vector.broadcast %cst_18 : f32 to vector<8x40xf32>
    %35 = arith.maximumf %33, %34 : vector<8x40xf32>
    %cst_19 = arith.constant dense<0.000000e+00> : vector<8x80xf32>
    %36 = tpu.matmul %35, %2, %cst_19 {dimension_numbers = #tpu.dot_dimension_numbers<[1], [0], [0], [1], [0, 0, 1, 1], [], []>} : vector<8x40xf32>, vector<40x80xf32>, vector<8x80xf32> -> vector<8x80xf32>
    %cst_20 = arith.constant dense<0.000000e+00> : vector<80xf32>
    %37 = vector.multi_reduction <add>, %36, %cst_20 [0] : vector<8x80xf32> to vector<80xf32>
    %38 = vector.shape_cast %37 : vector<80xf32> to vector<1x80xf32>
    %39 = arith.mulf %36, %36 : vector<8x80xf32>
    %cst_21 = arith.constant dense<0.000000e+00> : vector<80xf32>
    %40 = vector.multi_reduction <add>, %39, %cst_21 [0] : vector<8x80xf32> to vector<80xf32>
    %41 = vector.shape_cast %40 : vector<80xf32> to vector<1x80xf32>
    %cst_22 = arith.constant 1.250000e-01 : f32
    %42 = vector.broadcast %cst_22 : f32 to vector<1x80xf32>
    %43 = arith.mulf %38, %42 : vector<1x80xf32>
    %cst_23 = arith.constant 1.250000e-01 : f32
    %44 = vector.broadcast %cst_23 : f32 to vector<1x80xf32>
    %45 = arith.mulf %41, %44 : vector<1x80xf32>
    %46 = arith.mulf %43, %43 : vector<1x80xf32>
    %47 = arith.subf %45, %46 : vector<1x80xf32>
    %cst_24 = arith.constant 9.99999974E-6 : f32
    %48 = vector.broadcast %cst_24 : f32 to vector<1x80xf32>
    %49 = arith.addf %47, %48 : vector<1x80xf32>
    %50 = math.rsqrt %49 : vector<1x80xf32>
    %51 = arith.mulf %7, %50 : vector<1x80xf32>
    %52 = arith.mulf %43, %51 : vector<1x80xf32>
    %53 = arith.subf %8, %52 : vector<1x80xf32>
    %54 = vector.broadcast %51 : vector<1x80xf32> to vector<8x80xf32>
    %55 = arith.mulf %36, %54 : vector<8x80xf32>
    %56 = vector.broadcast %53 : vector<1x80xf32> to vector<8x80xf32>
    %57 = arith.addf %55, %56 : vector<8x80xf32>
    %cst_25 = arith.constant 0.000000e+00 : f32
    %58 = vector.broadcast %cst_25 : f32 to vector<8x80xf32>
    %59 = arith.maximumf %57, %58 : vector<8x80xf32>
    %cst_26 = arith.constant dense<0.000000e+00> : vector<8x20xf32>
    %60 = tpu.matmul %59, %3, %cst_26 {dimension_numbers = #tpu.dot_dimension_numbers<[1], [0], [0], [1], [0, 0, 1, 1], [], []>} : vector<8x80xf32>, vector<80x20xf32>, vector<8x20xf32> -> vector<8x20xf32>
    %cst_27 = arith.constant dense<0.000000e+00> : vector<20xf32>
    %61 = vector.multi_reduction <add>, %60, %cst_27 [0] : vector<8x20xf32> to vector<20xf32>
    %62 = vector.shape_cast %61 : vector<20xf32> to vector<1x20xf32>
    %63 = arith.mulf %60, %60 : vector<8x20xf32>
    %cst_28 = arith.constant dense<0.000000e+00> : vector<20xf32>
    %64 = vector.multi_reduction <add>, %63, %cst_28 [0] : vector<8x20xf32> to vector<20xf32>
    %65 = vector.shape_cast %64 : vector<20xf32> to vector<1x20xf32>
    %cst_29 = arith.constant 1.250000e-01 : f32
    %66 = vector.broadcast %cst_29 : f32 to vector<1x20xf32>
    %67 = arith.mulf %62, %66 : vector<1x20xf32>
    %cst_30 = arith.constant 1.250000e-01 : f32
    %68 = vector.broadcast %cst_30 : f32 to vector<1x20xf32>
    %69 = arith.mulf %65, %68 : vector<1x20xf32>
    %70 = arith.mulf %67, %67 : vector<1x20xf32>
    %71 = arith.subf %69, %70 : vector<1x20xf32>
    %cst_31 = arith.constant 9.99999974E-6 : f32
    %72 = vector.broadcast %cst_31 : f32 to vector<1x20xf32>
    %73 = arith.addf %71, %72 : vector<1x20xf32>
    %74 = math.rsqrt %73 : vector<1x20xf32>
    %75 = arith.mulf %9, %74 : vector<1x20xf32>
    %76 = arith.mulf %67, %75 : vector<1x20xf32>
    %77 = arith.subf %10, %76 : vector<1x20xf32>
    %78 = vector.broadcast %75 : vector<1x20xf32> to vector<8x20xf32>
    %79 = arith.mulf %60, %78 : vector<8x20xf32>
    %80 = vector.broadcast %77 : vector<1x20xf32> to vector<8x20xf32>
    %81 = arith.addf %79, %80 : vector<8x20xf32>
    %cst_32 = arith.constant 0.000000e+00 : f32
    %82 = vector.broadcast %cst_32 : f32 to vector<8x20xf32>
    %83 = arith.maximumf %81, %82 : vector<8x20xf32>
    %cst_33 = arith.constant dense<0.000000e+00> : vector<8x128xf32>
    %84 = tpu.matmul %83, %4, %cst_33 {dimension_numbers = #tpu.dot_dimension_numbers<[1], [0], [0], [1], [0, 0, 1, 1], [], []>} : vector<8x20xf32>, vector<20x128xf32>, vector<8x128xf32> -> vector<8x128xf32>
    %85 = vector.broadcast %11 : vector<1x128xf32> to vector<8x128xf32>
    %86 = arith.addf %84, %85 : vector<8x128xf32>
    %c0_34 = arith.constant 0 : index
    %c0_35 = arith.constant 0 : index
    %87 = vector.load %arg2[%c0_34, %c0_35] : memref<8x128xf32, #tpu.memory_space<vmem>>, vector<8x128xf32>
    tpu.vector_store %arg2[%c0_34, %c0_35], %86 {strides = array<i32>} : memref<8x128xf32, #tpu.memory_space<vmem>>, vector<8x128xf32>,
    return
  }
}

</mosaic_0001>

<llo_original>
// kernel: generator_forward.1
$region0: #{generator_forward.1}
  #allocation0 [shape = 'u32[]', space=smem, size = 0x4, offset = 0x4, fixed_abs, tag = 'smem constant byte address 0x4 - core index']
  #allocation1 [shape = 'u32[144,128]{1,0:T(1,128)}', space=vmem, size = 0x12000, scoped, tag = 'internal scratch']
  %s0 = inlined_call_operand.hbm [shape: f32[8,20], index: 0, kind: input, shape index: {}]
  %s1 = inlined_call_operand.hbm [shape: f32[168,128], index: 1, kind: input, shape index: {}]
  %s2 = inlined_call_operand.hbm [shape: f32[8,128], index: 2, kind: output, shape index: {}]
  %s3 = sld [smem:[#allocation0]]
  $region26: #{generator_forward.1} parent=0
    _
  %s5 = ssub.s32 1, %s3
  %s6 = scalar_select 0, %s5, %s3
  $region1: #{generator_forward.1} parent=0
    #allocation2 [shape = 'u8[4096]{0}', space=vmem, size = 0x1000, scoped, tag = 'input window, operand 0, single buffered']
    #allocation3 [shape = 's32[1]{0}', space=sflag, size = 0x4, scoped, tag = 'scoped memory for generator_forward.1']
    #allocation4 [shape = 's32[1]{0}', space=sflag, size = 0x4, scoped, tag = 'scoped memory for generator_forward.1']
    #allocation5 [shape = 'u8[86016]{0}', space=vmem, size = 0x15000, scoped, tag = 'input window, operand 1, single buffered']
    #allocation6 [shape = 's32[1]{0}', space=sflag, size = 0x4, scoped, tag = 'scoped memory for generator_forward.1']
    #allocation7 [shape = 'u8[4096]{0}', space=vmem, size = 0x1000, scoped, tag = 'output window, operand 0, single buffered']
    %7 = vsyncpa [#allocation3], 0
    %8 = vsyncpa [#allocation6], 0
    %9 = vsyncpa [#allocation4], 0
    // Predicated region
    $region2: #{generator_forward.1} parent=1 // pred_check
      _
    $region3: #{generator_forward.1} parent=1 // pred_check_branch
      %11 = sbr.rel (0) target = $region5
    $region4: #{generator_forward.1} parent=1 // pred_region
      %s13 = ssub.s32 128, 128
      %14 = vsyncadd [#allocation3], %s13
      %s16 = sshll.u32 [#allocation2], 4
      %s17 = int_to_ptr.vmem [resolvable:$true] %s16
      %19 = dma.hbm_to_vmem [thread:$0]  %s0, 128, %s17, [#allocation3]
    $region5: #{generator_forward.1} parent=1 // pred_fallthru
      _
    // Predicated region
    $region6: #{generator_forward.1} parent=1 // pred_check
      _
    $region7: #{generator_forward.1} parent=1 // pred_check_branch
      %21 = sbr.rel (0) target = $region9
    $region8: #{generator_forward.1} parent=1 // pred_region
      %s23 = ssub.s32 2688, 2688
      %24 = vsyncadd [#allocation6], %s23
      %s25 = sshll.u32 [#allocation5], 4
      %s26 = int_to_ptr.vmem [resolvable:$true] %s25
      %31 = dma.hbm_to_vmem [thread:$0]  %s1, 2688, %s26, [#allocation6], 128, 128, 8
    $region9: #{generator_forward.1} parent=1 // pred_fallthru
      _
    // Predicated region
    $region10: #{generator_forward.1} parent=1 // pred_check
      _
    $region11: #{generator_forward.1} parent=1 // pred_check_branch
      %33 = sbr.rel (0) target = $region13
    $region12: #{generator_forward.1} parent=1 // pred_region
      %34 = dma.done [#allocation3], 128
    $region13: #{generator_forward.1} parent=1 // pred_fallthru
      _
    // Predicated region
    $region14: #{generator_forward.1} parent=1 // pred_check
      _
    $region15: #{generator_forward.1} parent=1 // pred_check_branch
      %36 = sbr.rel (0) target = $region17
    $region16: #{generator_forward.1} parent=1 // pred_region
      %37 = dma.done [#allocation6], 2688
    $region17: #{generator_forward.1} parent=1 // pred_fallthru
      _
    %v38 = vld [vmem:[#allocation2] sm:$0xff]
    %v39 = vld [vmem:[#allocation5] sm:$0xff]
    %v40 = vld [vmem:[#allocation5 + $0x8] sm:$0xff]
    %v41 = vld [vmem:[#allocation5 + $0x10] sm:$0xf]
    %v42 = vld [vmem:[#allocation5 + $0x14] sm:$0xff]
    %v43 = vld [vmem:[#allocation5 + $0x1c] sm:$0xff]
    %v44 = vld [vmem:[#allocation5 + $0x24] sm:$0xff]
    %v45 = vld [vmem:[#allocation5 + $0x2c] sm:$0xff]
    %v46 = vld [vmem:[#allocation5 + $0x34] sm:$0xff]
    %v47 = vld [vmem:[#allocation5 + $0x3c] sm:$0xff]
    %v48 = vld [vmem:[#allocation5 + $0x44] sm:$0xff]
    %v49 = vld [vmem:[#allocation5 + $0x4c] sm:$0xff]
    %v50 = vld [vmem:[#allocation5 + $0x54] sm:$0xff]
    %v51 = vld [vmem:[#allocation5 + $0x5c] sm:$0xff]
    %v52 = vld [vmem:[#allocation5 + $0x64] sm:$0xff]
    %v53 = vld [vmem:[#allocation5 + $0x6c] sm:$0xff]
    %v54 = vld [vmem:[#allocation5 + $0x74] sm:$0xff]
    %v55 = vld [vmem:[#allocation5 + $0x7c] sm:$0xff]
    %v56 = vld [vmem:[#allocation5 + $0x84] sm:$0xff]
    %v57 = vld [vmem:[#allocation5 + $0x8c] sm:$0xff]
    %v58 = vld [vmem:[#allocation5 + $0x94] sm:$0xff]
    %v59 = vld [vmem:[#allocation5 + $0x9c] sm:$0xf]
    %v60 = vld [vmem:[#allocation5 + $0xa0] sm:$0x1]
    %v61 = vld [vmem:[#allocation5 + $0xa1] sm:$0x1]
    %v62 = vld [vmem:[#allocation5 + $0xa2] sm:$0x1]
    %v63 = vld [vmem:[#allocation5 + $0xa3] sm:$0x1]
    %v64 = vld [vmem:[#allocation5 + $0xa4] sm:$0x1]
    %v65 = vld [vmem:[#allocation5 + $0xa5] sm:$0x1]
    %v66 = vld [vmem:[#allocation5 + $0xa6] sm:$0x1]
    %vm67 = vcmask 162816
    %v69 = vsel %vm67, %v38, 0
    %vm71 = vcmask 1043456
    %v73 = vsel %vm71, %v41, 0
    %75 = vmatprep.subr.mxu0 0.0
    %76 = vmatpush1.msra.mxu0 %v39
    %77 = vmatprep.subr.mxu0 0.0
    %78 = vmatpush1.msra.mxu0 %v40
    %79 = vmatprep.subr.mxu0 0.0
    %80 = vmatpush1.msra.mxu0 %v73
    %81 = vmatprep.subr.mxu0 0.0
    %82 = vmatpush1.msra.mxu0 0.0
    %83 = vmatprep.subr.mxu0 0.0
    %84 = vmatpush1.msra.mxu0 0.0
    %85 = vmatprep.subr.mxu0 0.0
    %86 = vmatpush1.msra.mxu0 0.0
    %87 = vmatprep.subr.mxu0 0.0
    %88 = vmatpush1.msra.mxu0 0.0
    %89 = vmatprep.subr.mxu0 0.0
    %90 = vmatpush1.msra.mxu0 0.0
    %91 = vmatprep.subr.mxu0 0.0
    %92 = vmatpush1.msra.mxu0 0.0
    %93 = vmatprep.subr.mxu0 0.0
    %94 = vmatpush1.msra.mxu0 0.0
    %95 = vmatprep.subr.mxu0 0.0
    %96 = vmatpush1.msra.mxu0 0.0
    %97 = vmatprep.subr.mxu0 0.0
    %98 = vmatpush1.msra.mxu0 0.0
    %99 = vmatprep.subr.mxu0 0.0
    %100 = vmatpush1.msra.mxu0 0.0
    %101 = vmatprep.subr.mxu0 0.0
    %102 = vmatpush1.msra.mxu0 0.0
    %103 = vmatprep.subr.mxu0 0.0
    %104 = vmatpush1.msra.mxu0 0.0
    %105 = vmatprep.subr.mxu0 0.0
    %106 = vmatpush1.msra.mxu0 0.0
    %107 = vmatprep.subr.mxu0 0.0
    %108 = vmatpush1.msra.mxu0 0.0
    %109 = vmatprep.subr.mxu0 0.0
    %110 = vmatpush1.msra.mxu0 0.0
    %111 = vmatprep.subr.mxu0 0.0
    %112 = vmatpush1.msra.mxu0 0.0
    %113 = vmatprep.subr.mxu0 0.0
    %114 = vmatpush1.msra.mxu0 0.0
    %115 = vmatprep.subr.mxu0 0.0
    %116 = vmatpush1.msra.mxu0 0.0
    %117 = vmatprep.subr.mxu0 0.0
    %118 = vmatpush1.msra.mxu0 0.0
    %119 = vmatprep.subr.mxu0 0.0
    %120 = vmatpush1.msra.mxu0 0.0
    %121 = vmatprep.subr.mxu0 0.0
    %122 = vmatpush1.msra.mxu0 0.0
    %123 = vmatprep.subr.mxu0 0.0
    %124 = vmatpush1.msra.mxu0 0.0
    %125 = vmatprep.subr.mxu0 0.0
    %126 = vmatpush1.msra.mxu0 0.0
    %127 = vmatprep.subr.mxu0 0.0
    %128 = vmatpush1.msra.mxu0 0.0
    %129 = vmatprep.subr.mxu0 0.0
    %130 = vmatpush1.msra.mxu0 0.0
    %131 = vmatprep.subr.mxu0 0.0
    %132 = vmatpush1.msra.mxu0 0.0
    %133 = vmatprep.subr.mxu0 0.0
    %134 = vmatpush1.msra.mxu0 0.0
    %135 = vmatprep.subr.mxu0 0.0
    %136 = vmatpush1.msra.mxu0 0.0
    %137 = vmatprep.subr.mxu0 0.0
    %138 = vmatpush1.msra.mxu0 0.0
    %139 = vmatprep.mubr.f32.mxu0 0.0
    %140 = vmatmul.mubr.f32.gmra.mrb[0].mxu0 %v69
    %v141 = vpop.f32.mrb[0].mxu0
    %v142 = vadd.f32 0.0, %v141
    %v143 = vpop.f32.mrb[0].mxu0
    %144 = vdwg.mxu0
    %vm145 = vcmask 326656
    %v146 = vsel %vm145, %v142, 0.0
    %v147 = vrot.slane %v146, 4
    %v148 = vadd.f32 %v146, %v147
    %v149 = vrot.slane %v148, 2
    %v150 = vadd.f32 %v148, %v149
    %v151 = vrot.slane %v150, 1
    %v152 = vadd.f32 %v150, %v151
    %v153 = vmul.f32 %v142, %v142
    %v154 = vsel %vm145, %v153, 0.0
    %v155 = vrot.slane %v154, 4
    %v156 = vadd.f32 %v154, %v155
    %v157 = vrot.slane %v156, 2
    %v158 = vadd.f32 %v156, %v157
    %v159 = vrot.slane %v158, 1
    %v160 = vadd.f32 %v158, %v159
    %v161 = vmul.f32 %v152, 0.125
    %v162 = vmul.f32 %v160, 0.125
    %v163 = vmul.f32 %v161, %v161
    %v164 = vsub.f32 %v162, %v163
    %v165 = vadd.f32 %v164, 1e-05
    %v166 = vrsqrt.pop %v165
    %v167 = vmul.f32 %v60, %v166
    %v168 = vmul.f32 %v161, %v167
    %v169 = vsub.f32 %v61, %v168
    %v170 = vlaneseq
    %v171 = vshrl.u32 %v170, 7
    %v172 = vsub.s32 0, %v171
    %v173 = vrot.slane %v167, %v172
    %v174 = vmul.f32 %v142, %v173
    %v175 = vlaneseq
    %v176 = vshrl.u32 %v175, 7
    %v177 = vsub.s32 0, %v176
    %v178 = vrot.slane %v169, %v177
    %v179 = vadd.f32 %v174, %v178
    %v180 = vmax.f32 %v179, 0.0
    %v182 = vsel %vm145, %v180, 0
    %184 = vmatprep.subr.mxu0 0.0
    %185 = vmatpush1.msra.mxu0 %v42
    %186 = vmatprep.subr.mxu0 0.0
    %187 = vmatpush1.msra.mxu0 %v43
    %188 = vmatprep.subr.mxu0 0.0
    %189 = vmatpush1.msra.mxu0 %v44
    %190 = vmatprep.subr.mxu0 0.0
    %191 = vmatpush1.msra.mxu0 %v45
    %192 = vmatprep.subr.mxu0 0.0
    %193 = vmatpush1.msra.mxu0 %v46
    %194 = vmatprep.subr.mxu0 0.0
    %195 = vmatpush1.msra.mxu0 0.0
    %196 = vmatprep.subr.mxu0 0.0
    %197 = vmatpush1.msra.mxu0 0.0
    %198 = vmatprep.subr.mxu0 0.0
    %199 = vmatpush1.msra.mxu0 0.0
    %200 = vmatprep.subr.mxu0 0.0
    %201 = vmatpush1.msra.mxu0 0.0
    %202 = vmatprep.subr.mxu0 0.0
    %203 = vmatpush1.msra.mxu0 0.0
    %204 = vmatprep.subr.mxu0 0.0
    %205 = vmatpush1.msra.mxu0 0.0
    %206 = vmatprep.subr.mxu0 0.0
    %207 = vmatpush1.msra.mxu0 0.0
    %208 = vmatprep.subr.mxu0 0.0
    %209 = vmatpush1.msra.mxu0 0.0
    %210 = vmatprep.subr.mxu0 0.0
    %211 = vmatpush1.msra.mxu0 0.0
    %212 = vmatprep.subr.mxu0 0.0
    %213 = vmatpush1.msra.mxu0 0.0
    %214 = vmatprep.subr.mxu0 0.0
    %215 = vmatpush1.msra.mxu0 0.0
    %216 = vmatprep.subr.mxu0 0.0
    %217 = vmatpush1.msra.mxu0 0.0
    %218 = vmatprep.subr.mxu0 0.0
    %219 = vmatpush1.msra.mxu0 0.0
    %220 = vmatprep.subr.mxu0 0.0
    %221 = vmatpush1.msra.mxu0 0.0
    %222 = vmatprep.subr.mxu0 0.0
    %223 = vmatpush1.msra.mxu0 0.0
    %224 = vmatprep.subr.mxu0 0.0
    %225 = vmatpush1.msra.mxu0 0.0
    %226 = vmatprep.subr.mxu0 0.0
    %227 = vmatpush1.msra.mxu0 0.0
    %228 = vmatprep.subr.mxu0 0.0
    %229 = vmatpush1.msra.mxu0 0.0
    %230 = vmatprep.subr.mxu0 0.0
    %231 = vmatpush1.msra.mxu0 0.0
    %232 = vmatprep.subr.mxu0 0.0
    %233 = vmatpush1.msra.mxu0 0.0
    %234 = vmatprep.subr.mxu0 0.0
    %235 = vmatpush1.msra.mxu0 0.0
    %236 = vmatprep.subr.mxu0 0.0
    %237 = vmatpush1.msra.mxu0 0.0
    %238 = vmatprep.subr.mxu0 0.0
    %239 = vmatpush1.msra.mxu0 0.0
    %240 = vmatprep.subr.mxu0 0.0
    %241 = vmatpush1.msra.mxu0 0.0
    %242 = vmatprep.subr.mxu0 0.0
    %243 = vmatpush1.msra.mxu0 0.0
    %244 = vmatprep.subr.mxu0 0.0
    %245 = vmatpush1.msra.mxu0 0.0
    %246 = vmatprep.subr.mxu0 0.0
    %247 = vmatpush1.msra.mxu0 0.0
    %248 = vmatprep.mubr.f32.mxu0 0.0
    %249 = vmatmul.mubr.f32.gmra.mrb[0].mxu0 %v182
    %v250 = vpop.f32.mrb[0].mxu0
    %v251 = vadd.f32 0.0, %v250
    %v252 = vpop.f32.mrb[0].mxu0
    %253 = vdwg.mxu0
    %vm254 = vcmask 654336
    %v255 = vsel %vm254, %v251, 0.0
    %v256 = vrot.slane %v255, 4
    %v257 = vadd.f32 %v255, %v256
    %v258 = vrot.slane %v257, 2
    %v259 = vadd.f32 %v257, %v258
    %v260 = vrot.slane %v259, 1
    %v261 = vadd.f32 %v259, %v260
    %v262 = vmul.f32 %v251, %v251
    %v263 = vsel %vm254, %v262, 0.0
    %v264 = vrot.slane %v263, 4
    %v265 = vadd.f32 %v263, %v264
    %v266 = vrot.slane %v265, 2
    %v267 = vadd.f32 %v265, %v266
    %v268 = vrot.slane %v267, 1
    %v269 = vadd.f32 %v267, %v268
    %v270 = vmul.f32 %v261, 0.125
    %v271 = vmul.f32 %v269, 0.125
    %v272 = vmul.f32 %v270, %v270
    %v273 = vsub.f32 %v271, %v272
    %v274 = vadd.f32 %v273, 1e-05
    %v275 = vrsqrt.pop %v274
    %v276 = vmul.f32 %v62, %v275
    %v277 = vmul.f32 %v270, %v276
    %v278 = vsub.f32 %v63, %v277
    %v279 = vlaneseq
    %v280 = vshrl.u32 %v279, 7
    %v281 = vsub.s32 0, %v280
    %v282 = vrot.slane %v276, %v281
    %v283 = vmul.f32 %v251, %v282
    %v284 = vlaneseq
    %v285 = vshrl.u32 %v284, 7
    %v286 = vsub.s32 0, %v285
    %v287 = vrot.slane %v278, %v286
    %v288 = vadd.f32 %v283, %v287
    %v289 = vmax.f32 %v288, 0.0
    %v291 = vsel %vm254, %v289, 0
    %293 = vmatprep.subr.mxu0 0.0
    %294 = vmatpush1.msra.mxu0 %v47
    %295 = vmatprep.subr.mxu0 0.0
    %296 = vmatpush1.msra.mxu0 %v48
    %297 = vmatprep.subr.mxu0 0.0
    %298 = vmatpush1.msra.mxu0 %v49
    %299 = vmatprep.subr.mxu0 0.0
    %300 = vmatpush1.msra.mxu0 %v50
    %301 = vmatprep.subr.mxu0 0.0
    %302 = vmatpush1.msra.mxu0 %v51
    %303 = vmatprep.subr.mxu0 0.0
    %304 = vmatpush1.msra.mxu0 %v52
    %305 = vmatprep.subr.mxu0 0.0
    %306 = vmatpush1.msra.mxu0 %v53
    %307 = vmatprep.subr.mxu0 0.0
    %308 = vmatpush1.msra.mxu0 %v54
    %309 = vmatprep.subr.mxu0 0.0
    %310 = vmatpush1.msra.mxu0 %v55
    %311 = vmatprep.subr.mxu0 0.0
    %312 = vmatpush1.msra.mxu0 %v56
    %313 = vmatprep.subr.mxu0 0.0
    %314 = vmatpush1.msra.mxu0 0.0
    %315 = vmatprep.subr.mxu0 0.0
    %316 = vmatpush1.msra.mxu0 0.0
    %317 = vmatprep.subr.mxu0 0.0
    %318 = vmatpush1.msra.mxu0 0.0
    %319 = vmatprep.subr.mxu0 0.0
    %320 = vmatpush1.msra.mxu0 0.0
    %321 = vmatprep.subr.mxu0 0.0
    %322 = vmatpush1.msra.mxu0 0.0
    %323 = vmatprep.subr.mxu0 0.0
    %324 = vmatpush1.msra.mxu0 0.0
    %325 = vmatprep.subr.mxu0 0.0
    %326 = vmatpush1.msra.mxu0 0.0
    %327 = vmatprep.subr.mxu0 0.0
    %328 = vmatpush1.msra.mxu0 0.0
    %329 = vmatprep.subr.mxu0 0.0
    %330 = vmatpush1.msra.mxu0 0.0
    %331 = vmatprep.subr.mxu0 0.0
    %332 = vmatpush1.msra.mxu0 0.0
    %333 = vmatprep.subr.mxu0 0.0
    %334 = vmatpush1.msra.mxu0 0.0
    %335 = vmatprep.subr.mxu0 0.0
    %336 = vmatpush1.msra.mxu0 0.0
    %337 = vmatprep.subr.mxu0 0.0
    %338 = vmatpush1.msra.mxu0 0.0
    %339 = vmatprep.subr.mxu0 0.0
    %340 = vmatpush1.msra.mxu0 0.0
    %341 = vmatprep.subr.mxu0 0.0
    %342 = vmatpush1.msra.mxu0 0.0
    %343 = vmatprep.subr.mxu0 0.0
    %344 = vmatpush1.msra.mxu0 0.0
    %345 = vmatprep.subr.mxu0 0.0
    %346 = vmatpush1.msra.mxu0 0.0
    %347 = vmatprep.subr.mxu0 0.0
    %348 = vmatpush1.msra.mxu0 0.0
    %349 = vmatprep.subr.mxu0 0.0
    %350 = vmatpush1.msra.mxu0 0.0
    %351 = vmatprep.subr.mxu0 0.0
    %352 = vmatpush1.msra.mxu0 0.0
    %353 = vmatprep.subr.mxu0 0.0
    %354 = vmatpush1.msra.mxu0 0.0
    %355 = vmatprep.subr.mxu0 0.0
    %356 = vmatpush1.msra.mxu0 0.0
    %357 = vmatprep.mubr.f32.mxu0 0.0
    %358 = vmatmul.mubr.f32.gmra.mrb[0].mxu0 %v291
    %v359 = vpop.f32.mrb[0].mxu0
    %v360 = vadd.f32 0.0, %v359
    %v361 = vpop.f32.mrb[0].mxu0
    %362 = vdwg.mxu0
    %v363 = vsel %vm67, %v360, 0.0
    %v364 = vrot.slane %v363, 4
    %v365 = vadd.f32 %v363, %v364
    %v366 = vrot.slane %v365, 2
    %v367 = vadd.f32 %v365, %v366
    %v368 = vrot.slane %v367, 1
    %v369 = vadd.f32 %v367, %v368
    %v370 = vmul.f32 %v360, %v360
    %v371 = vsel %vm67, %v370, 0.0
    %v372 = vrot.slane %v371, 4
    %v373 = vadd.f32 %v371, %v372
    %v374 = vrot.slane %v373, 2
    %v375 = vadd.f32 %v373, %v374
    %v376 = vrot.slane %v375, 1
    %v377 = vadd.f32 %v375, %v376
    %v378 = vmul.f32 %v369, 0.125
    %v379 = vmul.f32 %v377, 0.125
    %v380 = vmul.f32 %v378, %v378
    %v381 = vsub.f32 %v379, %v380
    %v382 = vadd.f32 %v381, 1e-05
    %v383 = vrsqrt.pop %v382
    %v384 = vmul.f32 %v64, %v383
    %v385 = vmul.f32 %v378, %v384
    %v386 = vsub.f32 %v65, %v385
    %v387 = vlaneseq
    %v388 = vshrl.u32 %v387, 7
    %v389 = vsub.s32 0, %v388
    %v390 = vrot.slane %v384, %v389
    %v391 = vmul.f32 %v360, %v390
    %v392 = vlaneseq
    %v393 = vshrl.u32 %v392, 7
    %v394 = vsub.s32 0, %v393
    %v395 = vrot.slane %v386, %v394
    %v396 = vadd.f32 %v391, %v395
    %v397 = vmax.f32 %v396, 0.0
    %v398 = vlaneseq
    %v399 = vshrl.u32 %v398, 7
    %v400 = vsub.s32 0, %v399
    %v401 = vrot.slane %v66, %v400
    %v403 = vsel %vm67, %v397, 0
    %v406 = vsel %vm71, %v59, 0
    %408 = vmatprep.subr.mxu0 0.0
    %409 = vmatpush1.msra.mxu0 %v57
    %410 = vmatprep.subr.mxu0 0.0
    %411 = vmatpush1.msra.mxu0 %v58
    %412 = vmatprep.subr.mxu0 0.0
    %413 = vmatpush1.msra.mxu0 %v406
    %414 = vmatprep.subr.mxu0 0.0
    %415 = vmatpush1.msra.mxu0 0.0
    %416 = vmatprep.subr.mxu0 0.0
    %417 = vmatpush1.msra.mxu0 0.0
    %418 = vmatprep.subr.mxu0 0.0
    %419 = vmatpush1.msra.mxu0 0.0
    %420 = vmatprep.subr.mxu0 0.0
    %421 = vmatpush1.msra.mxu0 0.0
    %422 = vmatprep.subr.mxu0 0.0
    %423 = vmatpush1.msra.mxu0 0.0
    %424 = vmatprep.subr.mxu0 0.0
    %425 = vmatpush1.msra.mxu0 0.0
    %426 = vmatprep.subr.mxu0 0.0
    %427 = vmatpush1.msra.mxu0 0.0
    %428 = vmatprep.subr.mxu0 0.0
    %429 = vmatpush1.msra.mxu0 0.0
    %430 = vmatprep.subr.mxu0 0.0
    %431 = vmatpush1.msra.mxu0 0.0
    %432 = vmatprep.subr.mxu0 0.0
    %433 = vmatpush1.msra.mxu0 0.0
    %434 = vmatprep.subr.mxu0 0.0
    %435 = vmatpush1.msra.mxu0 0.0
    %436 = vmatprep.subr.mxu0 0.0
    %437 = vmatpush1.msra.mxu0 0.0
    %438 = vmatprep.subr.mxu0 0.0
    %439 = vmatpush1.msra.mxu0 0.0
    %440 = vmatprep.subr.mxu0 0.0
    %441 = vmatpush1.msra.mxu0 0.0
    %442 = vmatprep.subr.mxu0 0.0
    %443 = vmatpush1.msra.mxu0 0.0
    %444 = vmatprep.subr.mxu0 0.0
    %445 = vmatpush1.msra.mxu0 0.0
    %446 = vmatprep.subr.mxu0 0.0
    %447 = vmatpush1.msra.mxu0 0.0
    %448 = vmatprep.subr.mxu0 0.0
    %449 = vmatpush1.msra.mxu0 0.0
    %450 = vmatprep.subr.mxu0 0.0
    %451 = vmatpush1.msra.mxu0 0.0
    %452 = vmatprep.subr.mxu0 0.0
    %453 = vmatpush1.msra.mxu0 0.0
    %454 = vmatprep.subr.mxu0 0.0
    %455 = vmatpush1.msra.mxu0 0.0
    %456 = vmatprep.subr.mxu0 0.0
    %457 = vmatpush1.msra.mxu0 0.0
    %458 = vmatprep.subr.mxu0 0.0
    %459 = vmatpush1.msra.mxu0 0.0
    %460 = vmatprep.subr.mxu0 0.0
    %461 = vmatpush1.msra.mxu0 0.0
    %462 = vmatprep.subr.mxu0 0.0
    %463 = vmatpush1.msra.mxu0 0.0
    %464 = vmatprep.subr.mxu0 0.0
    %465 = vmatpush1.msra.mxu0 0.0
    %466 = vmatprep.subr.mxu0 0.0
    %467 = vmatpush1.msra.mxu0 0.0
    %468 = vmatprep.subr.mxu0 0.0
    %469 = vmatpush1.msra.mxu0 0.0
    %470 = vmatprep.subr.mxu0 0.0
    %471 = vmatpush1.msra.mxu0 0.0
    %472 = vmatprep.mubr.f32.mxu0 0.0
    %473 = vmatmul.mubr.f32.gmra.mrb[0].mxu0 %v403
    %v474 = vpop.f32.mrb[0].mxu0
    %v475 = vadd.f32 %v401, %v474
    %v476 = vpop.f32.mrb[0].mxu0
    %477 = vdwg.mxu0
    %478 = vst [vmem:[#allocation7] sm:$0xff] %v475
    // Predicated region
    $region18: #{generator_forward.1} parent=1 // pred_check
      _
    $region19: #{generator_forward.1} parent=1 // pred_check_branch
      %480 = sbr.rel (0) target = $region21
    $region20: #{generator_forward.1} parent=1 // pred_region
      %s482 = ssub.s32 128, 128
      %483 = vsyncadd [#allocation4], %s482
      %s485 = sshll.u32 [#allocation7], 4
      %s486 = int_to_ptr.vmem [resolvable:$true] %s485
      %488 = dma.vmem_to_hbm [thread:$0]  %s486, 128, %s2, [#allocation4]
    $region21: #{generator_forward.1} parent=1 // pred_fallthru
      _
    // Predicated region
    $region22: #{generator_forward.1} parent=1 // pred_check
      _
    $region23: #{generator_forward.1} parent=1 // pred_check_branch
      %490 = sbr.rel (0) target = $region25
    $region24: #{generator_forward.1} parent=1 // pred_region
      %491 = dma.done [#allocation4], 128
    $region25: #{generator_forward.1} parent=1 // pred_fallthru
      _
    %492 = vsyncpa [#allocation3], 1
    %493 = vsyncpa [#allocation6], 1
    %494 = vsyncpa [#allocation4], 1

</llo_original>
